<compile_context>
chip_gen: v6e
topology: v6e:2x2x1
jax: 0.10.0
libtpu: 0.0.40
codegen_flags: <defaults>
</compile_context>

<pallas_src>
import jax
import jax.numpy as jnp
from jax.experimental import pallas as pl
from jax.experimental.pallas import tpu as pltpu

KERNEL_SIZE = 16
STRIDE = 2
LANE = 128


def _round_up(a, b):
    return (a + b - 1) // b * b


# --------------------------- Pallas kernel ----------------------------------

def crnn_fused_kernel(x_ref, wxg_ref, bxg_ref, whh_ref, wd_ref, bd_ref,
                      out_ref, gx_ref):
    """Fused conv-as-matmul + LSTM recurrence + dense head for one batch tile.

    x_ref:   (TILE_B*T, CLp) bf16, rows time-major within the tile
             (row = t*TILE_B + b_local); each row is a flattened segment.
    wxg_ref: (CLp, GP) bf16   -- folded (conv+mean) @ W_ih, gates packed [i,f,o,g].
    bxg_ref: (1, GP)   f32    -- folded conv_b @ W_ih + (b_ih + b_hh), packed.
    whh_ref: (H, GP)   bf16   -- recurrent weights, gates packed [i,f,o,g].
    wd_ref:  (H, CP)   bf16   -- dense weights, lane-padded.
    bd_ref:  (1, CP)   f32
    out_ref: (TILE_B, CP) f32
    gx_ref:  (TILE_B*T, GP) bf16 VMEM scratch (precomputed gate pre-activations).
    """
    TBT = x_ref.shape[0]
    TB = out_ref.shape[0]
    T = TBT // TB
    H = whh_ref.shape[0]

    # One MXU matmul: raw segments -> per-timestep LSTM gate pre-activations
    # (conv + mean-pool + input projection all folded).  Stored bf16 to halve
    # the largest per-tile VMEM buffer.
    gx_ref[...] = (
        jnp.dot(x_ref[...], wxg_ref[...], preferred_element_type=jnp.float32)
        + bxg_ref[...]).astype(gx_ref.dtype)

    h = jnp.zeros((TB, H), jnp.float32)
    c = jnp.zeros((TB, H), jnp.float32)

    def step(h, c, gx_t):
        gates = gx_t + jnp.dot(h.astype(whh_ref.dtype), whh_ref[...],
                               preferred_element_type=jnp.float32)
        # Packed gate order [i, f, o, g]: one sigmoid covers i/f/o, one tanh g.
        sig = jax.nn.sigmoid(gates[:, 0:3 * H])
        i = sig[:, 0:H]
        f = sig[:, H:2 * H]
        o = sig[:, 2 * H:3 * H]
        g = jnp.tanh(gates[:, 3 * H:4 * H])
        c_new = f * c + i * g
        h_new = o * jnp.tanh(c_new)
        return h_new, c_new

    if T <= 8:
        # Short static trip count: fully unroll.
        for t in range(T):
            h, c = step(h, c, gx_ref[t * TB:(t + 1) * TB, :].astype(jnp.float32))
    else:
        # Long sequences: partially unrolled fori_loop (scheduler visibility,
        # tight live ranges for h/c).
        def body(t, hc):
            h, c = hc
            start = pl.multiple_of(t * TB, TB)
            gx_t = gx_ref[pl.ds(start, TB), :].astype(jnp.float32)
            return step(h, c, gx_t)
        h, c = jax.lax.fori_loop(0, T, body, (h, c), unroll=2)

    # Dense head on the final hidden state; lane-dense (CP multiple of 128) store.
    out_ref[...] = (jnp.dot(h.astype(wd_ref.dtype), wd_ref[...],
                            preferred_element_type=jnp.float32) + bd_ref[...])


# ------------------------------ wrapper --------------------------------------

def _vmem_limit_bytes():
    """Generation-aware scoped-VMEM limit (v5e/v6e: 128 MiB physical, v7x: 64)."""
    try:
        cap = int(pltpu.get_tpu_info().vmem_capacity_bytes)
    except Exception:
        cap = 64 << 20          # conservative (v7x per-TensorCore VMEM)
    return max(min(int(cap * 0.8), 100 << 20), 16 << 20)


def _pick_tile_b(B, T, H, GP, CLp, CP, vmem_limit):
    """Largest legal batch tile that fits the VMEM budget, preferring >=2 grid
    steps so both v7x TensorCores get work and the input DMA pipelines."""
    # Constant weight/bias blocks, counted double-buffered (conservative: the
    # BlockSpec pipeline may keep two copies even though the index_map is
    # constant; after gate packing these blocks are small anyway).
    fixed = 2 * (CLp * GP * 2 + GP * 4 + H * GP * 2 + H * CP * 2 + CP * 4)
    # Per-batch-row footprint: bf16 x tile (double-buffered), bf16 gx scratch,
    # f32 output tile (double-buffered).
    per_b = 2 * (T * CLp * 2) + T * GP * 2 + 2 * (CP * 4)
    budget = max(vmem_limit - fixed - (2 << 20), per_b)   # headroom for spills
    cap = max(1, budget // per_b)

    candidates = [t for t in (512, 256, 128, 64, 32, 16, 8) if B % t == 0]
    # Prefer the largest tile that fits AND leaves >=2 grid steps.
    for t in candidates:
        if t <= cap and B // t >= 2:
            return t
    # Otherwise the largest tile that fits (single step).
    for t in candidates:
        if t <= cap:
            return t
    # Small / indivisible batches: whole batch (block == full dim is legal).
    return B


def _prepare_weights(params, n_len_seg):
    """Fold conv+mean into the LSTM input projection and pack gates tight in
    order [i, f, o, g].  All one-time, wrapper-side, f32 math; matmul operands
    cast to bf16 at the end."""
    conv_w = params["conv_w"]                    # (H, C_in, K)
    H, C_in, K = conv_w.shape
    L_seg = n_len_seg
    L_out = (L_seg - K) // STRIDE + 1
    n_classes = params["dense_w"].shape[0]

    CL = C_in * L_seg
    CLp = _round_up(CL, LANE)
    GP = _round_up(4 * H, LANE)                  # packed gate width (tight 4H)
    CP = _round_up(n_classes, LANE)

    # conv + mean folded into W_eff[(ic, s), oc].
    w_t = jnp.transpose(conv_w, (1, 2, 0)).astype(jnp.float32)   # (C_in, K, H)
    w_eff = jnp.zeros((C_in, L_seg, H), jnp.float32)
    for t in range(L_out):
        w_eff = w_eff.at[:, STRIDE * t:STRIDE * t + K, :].add(w_t)
    w_eff = (w_eff / L_out).reshape(CL, H)
    conv_b = params["conv_b"].astype(jnp.float32)                # (H,)

    # Torch gate order is [i, f, g, o]; pack columns tight as [i, f, o, g].
    GATE_ORDER = (0, 1, 3, 2)

    def pack_cols(w):                            # torch (4H, H) -> (H, 4H)
        wt = jnp.transpose(w).astype(jnp.float32)
        return jnp.concatenate([wt[:, g * H:(g + 1) * H] for g in GATE_ORDER],
                               axis=1)

    def pack_vec(b):                             # (4H,) -> (4H,)
        return jnp.concatenate([b[g * H:(g + 1) * H] for g in GATE_ORDER]
                               ).astype(jnp.float32)

    wih = pack_cols(params["lstm_w_ih"])                         # (H, 4H)
    whh = pack_cols(params["lstm_w_hh"])                         # (H, 4H)
    b_lstm = pack_vec(params["lstm_b_ih"] + params["lstm_b_hh"]) # (4H,)

    # Fold conv+mean into the input projection: gates_x = x @ W_xg + b_xg.
    w_xg = jnp.zeros((CLp, GP), jnp.float32).at[:CL, :4 * H].set(w_eff @ wih)
    b_xg = jnp.zeros((1, GP), jnp.float32).at[0, :4 * H].set(conv_b @ wih + b_lstm)
    whh_p = jnp.zeros((H, GP), jnp.float32).at[:, :4 * H].set(whh)

    wd_p = (jnp.zeros((H, CP), jnp.float32)
            .at[:, :n_classes].set(jnp.transpose(params["dense_w"])))
    bd_p = jnp.zeros((1, CP), jnp.float32).at[0, :n_classes].set(params["dense_b"])

    weights = dict(
        w_xg=w_xg.astype(jnp.bfloat16),
        b_xg=b_xg,
        whh=whh_p.astype(jnp.bfloat16),
        wd=wd_p.astype(jnp.bfloat16),
        bd=bd_p,
    )
    dims = dict(H=H, GP=GP, CL=CL, CLp=CLp, CP=CP, n_classes=n_classes)
    return weights, dims


def crnn_forward(x, params, n_len_seg):
    """x: (n_samples, in_channels, n_length) f32 -> (n_samples, n_classes) f32."""
    B, C_in, L = x.shape
    assert L % n_len_seg == 0, "Input n_length should divided by n_len_seg"
    T = L // n_len_seg

    weights, dims = _prepare_weights(params, n_len_seg)
    H, GP, CL, CLp, CP = dims["H"], dims["GP"], dims["CL"], dims["CLp"], dims["CP"]
    n_classes = dims["n_classes"]

    vmem_limit = _vmem_limit_bytes()
    TILE_B = _pick_tile_b(B, T, H, GP, CLp, CP, vmem_limit)
    assert B % TILE_B == 0
    G = B // TILE_B

    # Segment + single transpose to the kernel's time-major-within-tile layout:
    # row index = (g*T + t)*TILE_B + b_local, columns = flattened (C_in, L_seg).
    segs = x.reshape(G, TILE_B, C_in, T, n_len_seg)
    segs = jnp.transpose(segs, (0, 3, 1, 2, 4))          # (G, T, TILE_B, C_in, L_seg)
    x2d = segs.reshape(B * T, CL)
    if CLp > CL:
        x2d = jnp.pad(x2d, ((0, 0), (0, CLp - CL)))
    x2d = x2d.astype(jnp.bfloat16)

    out_padded = pl.pallas_call(
        crnn_fused_kernel,
        out_shape=jax.ShapeDtypeStruct((B, CP), jnp.float32),
        grid_spec=pltpu.PrefetchScalarGridSpec(
            num_scalar_prefetch=0,
            grid=(G,),
            in_specs=[
                pl.BlockSpec((TILE_B * T, CLp), lambda i: (i, 0)),   # segments
                pl.BlockSpec((CLp, GP), lambda i: (0, 0)),           # W_xg
                pl.BlockSpec((1, GP), lambda i: (0, 0)),             # b_xg
                pl.BlockSpec((H, GP), lambda i: (0, 0)),             # W_hh
                pl.BlockSpec((H, CP), lambda i: (0, 0)),             # W_dense
                pl.BlockSpec((1, CP), lambda i: (0, 0)),             # b_dense
            ],
            out_specs=pl.BlockSpec((TILE_B, CP), lambda i: (i, 0)),
            scratch_shapes=[pltpu.VMEM((TILE_B * T, GP), jnp.bfloat16)],
        ),
        compiler_params=pltpu.CompilerParams(
            dimension_semantics=("parallel",),
            vmem_limit_bytes=vmem_limit),
    )(x2d, weights["w_xg"], weights["b_xg"], weights["whh"],
      weights["wd"], weights["bd"])

    return out_padded[:, :n_classes]


# --------------------------- pure-JAX reference ------------------------------

def crnn_reference(x, params, n_len_seg):
    n_samples, n_channel, n_length = x.shape
    n_seg = n_length // n_len_seg
    out_channels = params["conv_w"].shape[0]
    K = params["conv_w"].shape[-1]

    segs = jnp.transpose(x, (0, 2, 1)).reshape(-1, n_len_seg, n_channel)
    segs = jnp.transpose(segs, (0, 2, 1))
    L_out = (n_len_seg - K) // STRIDE + 1
    patches = jnp.stack([segs[:, :, STRIDE * t: STRIDE * t + K]
                         for t in range(L_out)], axis=-1)           # (N, C, K, T)
    conv = (jnp.einsum('nckt,ock->not', patches, params["conv_w"])
            + params["conv_b"][None, :, None])
    feat = conv.mean(-1)                                            # (N, C_out)
    seq = feat.reshape(n_samples, n_seg, out_channels)

    H = out_channels
    h = jnp.zeros((n_samples, H), jnp.float32)
    c = jnp.zeros((n_samples, H), jnp.float32)
    wih, whh = params["lstm_w_ih"], params["lstm_w_hh"]
    b = params["lstm_b_ih"] + params["lstm_b_hh"]
    for t in range(n_seg):
        g = seq[:, t, :] @ wih.T + h @ whh.T + b
        i = jax.nn.sigmoid(g[:, :H])
        f = jax.nn.sigmoid(g[:, H:2 * H])
        gg = jnp.tanh(g[:, 2 * H:3 * H])
        o = jax.nn.sigmoid(g[:, 3 * H:4 * H])
        c = f * c + i * gg
        h = o * jnp.tanh(c)
    return h @ params["dense_w"].T + params["dense_b"]


# --------------------------------- main ---------------------------------------

if __name__ == "__main__":
    # Small shapes consistent with the module's forward:
    n_samples, in_channels, n_length = 2, 4, 64
    n_len_seg = 32                  # n_seg = 2; conv output length = (32-16)//2+1 = 9
    out_channels = 32
    n_classes = 5

    key = jax.random.PRNGKey(0)
    k_x, k_cw, k_cb, k_ih, k_hh, k_bih, k_bhh, k_dw, k_db = jax.random.split(key, 9)

    params = {
        "conv_w":    0.1 * jax.random.normal(k_cw, (out_channels, in_channels, KERNEL_SIZE), jnp.float32),
        "conv_b":    0.1 * jax.random.normal(k_cb, (out_channels,), jnp.float32),
        "lstm_w_ih": 0.1 * jax.random.normal(k_ih, (4 * out_channels, out_channels), jnp.float32),
        "lstm_w_hh": 0.1 * jax.random.normal(k_hh, (4 * out_channels, out_channels), jnp.float32),
        "lstm_b_ih": 0.1 * jax.random.normal(k_bih, (4 * out_channels,), jnp.float32),
        "lstm_b_hh": 0.1 * jax.random.normal(k_bhh, (4 * out_channels,), jnp.float32),
        "dense_w":   0.1 * jax.random.normal(k_dw, (n_classes, out_channels), jnp.float32),
        "dense_b":   0.1 * jax.random.normal(k_db, (n_classes,), jnp.float32),
    }

    x = jax.random.normal(k_x, (n_samples, in_channels, n_length), jnp.float32)

    fwd = jax.jit(lambda xx: crnn_forward(xx, params, n_len_seg))
    out = jax.block_until_ready(fwd(x))
    ref = jax.block_until_ready(crnn_reference(x, params, n_len_seg))

    assert out.shape == (n_samples, n_classes), out.shape
    assert bool(jnp.all(jnp.isfinite(out)))
    # Matmul operands / gx scratch are bf16 (MXU rate); state and accumulation
    # are f32 -> looser tolerance.
    assert bool(jnp.allclose(out, ref, atol=1e-2, rtol=1e-2)), (
        f"max abs err {float(jnp.max(jnp.abs(out - ref)))}")
    print("KERNEL_OK")
</pallas_src>

<mosaic_0001>
module attributes {stable_mosaic.version = 11 : i64} {
  func.func @crnn_fused_kernel(%arg0: i32, %arg1: memref<4x128xbf16, #tpu.memory_space<vmem>>, %arg2: memref<128x128xbf16, #tpu.memory_space<vmem>>, %arg3: memref<1x128xf32, #tpu.memory_space<vmem>>, %arg4: memref<32x128xbf16, #tpu.memory_space<vmem>>, %arg5: memref<32x128xbf16, #tpu.memory_space<vmem>>, %arg6: memref<1x128xf32, #tpu.memory_space<vmem>>, %arg7: memref<2x128xf32, #tpu.memory_space<vmem>>, %arg8: memref<4x128xbf16, #tpu.memory_space<vmem>>) attributes {dimension_semantics = [#tpu.dimension_semantics<parallel>], iteration_bounds = array<i64: 1>, scalar_prefetch = 0 : i64, scratch_operands = 1 : i64, tpu.core_type = #tpu.core_type<tc>, window_params = [{transform_indices = @transform_0, window_bounds = array<i64: 4, 128>}, {pipeline_mode = #tpu.pipeline_mode<synchronous>, transform_indices = @transform_1, window_bounds = array<i64: 128, 128>}, {pipeline_mode = #tpu.pipeline_mode<synchronous>, transform_indices = @transform_2, window_bounds = array<i64: 1, 128>}, {pipeline_mode = #tpu.pipeline_mode<synchronous>, transform_indices = @transform_3, window_bounds = array<i64: 32, 128>}, {pipeline_mode = #tpu.pipeline_mode<synchronous>, transform_indices = @transform_4, window_bounds = array<i64: 32, 128>}, {pipeline_mode = #tpu.pipeline_mode<synchronous>, transform_indices = @transform_5, window_bounds = array<i64: 1, 128>}, {transform_indices = @transform_6, window_bounds = array<i64: 2, 128>}]} {
    %c0 = arith.constant 0 : index
    %c0_0 = arith.constant 0 : index
    %0 = vector.load %arg1[%c0, %c0_0] : memref<4x128xbf16, #tpu.memory_space<vmem>>, vector<4x128xbf16>
    %c0_1 = arith.constant 0 : index
    %c0_2 = arith.constant 0 : index
    %1 = vector.load %arg2[%c0_1, %c0_2] : memref<128x128xbf16, #tpu.memory_space<vmem>>, vector<128x128xbf16>
    %cst = arith.constant dense<0.000000e+00> : vector<4x128xf32>
    %2 = tpu.matmul %0, %1, %cst {dimension_numbers = #tpu.dot_dimension_numbers<[1], [0], [0], [1], [0, 0, 1, 1], [], []>} : vector<4x128xbf16>, vector<128x128xbf16>, vector<4x128xf32> -> vector<4x128xf32>
    %c0_3 = arith.constant 0 : index
    %c0_4 = arith.constant 0 : index
    %3 = vector.load %arg3[%c0_3, %c0_4] : memref<1x128xf32, #tpu.memory_space<vmem>>, vector<1x128xf32>
    %4 = vector.broadcast %3 : vector<1x128xf32> to vector<4x128xf32>
    %5 = arith.addf %2, %4 : vector<4x128xf32>
    %6 = arith.truncf %5 : vector<4x128xf32> to vector<4x128xbf16>
    %c0_5 = arith.constant 0 : index
    %c0_6 = arith.constant 0 : index
    %7 = vector.load %arg8[%c0_5, %c0_6] : memref<4x128xbf16, #tpu.memory_space<vmem>>, vector<4x128xbf16>
    tpu.vector_store %arg8[%c0_5, %c0_6], %6 {strides = array<i32>} : memref<4x128xbf16, #tpu.memory_space<vmem>>, vector<4x128xbf16>,
    %cst_7 = arith.constant 0.000000e+00 : f32
    %8 = vector.broadcast %cst_7 : f32 to vector<2x32xf32>
    %cst_8 = arith.constant 0.000000e+00 : f32
    %9 = vector.broadcast %cst_8 : f32 to vector<2x32xf32>
    %c0_9 = arith.constant 0 : index
    %c0_10 = arith.constant 0 : index
    %10 = vector.load %arg8[%c0_9, %c0_10] : memref<4x128xbf16, #tpu.memory_space<vmem>>, vector<2x128xbf16>
    %11 = arith.extf %10 : vector<2x128xbf16> to vector<2x128xf32>
    %12 = arith.truncf %8 : vector<2x32xf32> to vector<2x32xbf16>
    %c0_11 = arith.constant 0 : index
    %c0_12 = arith.constant 0 : index
    %13 = vector.load %arg4[%c0_11, %c0_12] : memref<32x128xbf16, #tpu.memory_space<vmem>>, vector<32x128xbf16>
    %cst_13 = arith.constant dense<0.000000e+00> : vector<2x128xf32>
    %14 = tpu.matmul %12, %13, %cst_13 {dimension_numbers = #tpu.dot_dimension_numbers<[1], [0], [0], [1], [0, 0, 1, 1], [], []>} : vector<2x32xbf16>, vector<32x128xbf16>, vector<2x128xf32> -> vector<2x128xf32>
    %15 = arith.addf %11, %14 : vector<2x128xf32>
    %16 = vector.extract_strided_slice %15 {offsets = [0, 0], sizes = [2, 96], strides = [1, 1]} : vector<2x128xf32> to vector<2x96xf32>
    %17 = arith.negf %16 : vector<2x96xf32>
    %18 = math.exp %17 : vector<2x96xf32>
    %cst_14 = arith.constant 1.000000e+00 : f32
    %19 = vector.broadcast %cst_14 : f32 to vector<2x96xf32>
    %20 = arith.addf %19, %18 : vector<2x96xf32>
    %21 = arith.divf %19, %20 : vector<2x96xf32>
    %22 = vector.extract_strided_slice %21 {offsets = [0, 0], sizes = [2, 32], strides = [1, 1]} : vector<2x96xf32> to vector<2x32xf32>
    %23 = vector.extract_strided_slice %21 {offsets = [0, 32], sizes = [2, 32], strides = [1, 1]} : vector<2x96xf32> to vector<2x32xf32>
    %24 = vector.extract_strided_slice %21 {offsets = [0, 64], sizes = [2, 32], strides = [1, 1]} : vector<2x96xf32> to vector<2x32xf32>
    %25 = vector.extract_strided_slice %15 {offsets = [0, 96], sizes = [2, 32], strides = [1, 1]} : vector<2x128xf32> to vector<2x32xf32>
    %26 = math.tanh %25 : vector<2x32xf32>
    %27 = arith.mulf %23, %9 : vector<2x32xf32>
    %28 = arith.mulf %22, %26 : vector<2x32xf32>
    %29 = arith.addf %27, %28 : vector<2x32xf32>
    %30 = math.tanh %29 : vector<2x32xf32>
    %31 = arith.mulf %24, %30 : vector<2x32xf32>
    %c2 = arith.constant 2 : index
    %c0_15 = arith.constant 0 : index
    %32 = vector.load %arg8[%c2, %c0_15] : memref<4x128xbf16, #tpu.memory_space<vmem>>, vector<2x128xbf16>
    %33 = arith.extf %32 : vector<2x128xbf16> to vector<2x128xf32>
    %34 = arith.truncf %31 : vector<2x32xf32> to vector<2x32xbf16>
    %c0_16 = arith.constant 0 : index
    %c0_17 = arith.constant 0 : index
    %35 = vector.load %arg4[%c0_16, %c0_17] : memref<32x128xbf16, #tpu.memory_space<vmem>>, vector<32x128xbf16>
    %cst_18 = arith.constant dense<0.000000e+00> : vector<2x128xf32>
    %36 = tpu.matmul %34, %35, %cst_18 {dimension_numbers = #tpu.dot_dimension_numbers<[1], [0], [0], [1], [0, 0, 1, 1], [], []>} : vector<2x32xbf16>, vector<32x128xbf16>, vector<2x128xf32> -> vector<2x128xf32>
    %37 = arith.addf %33, %36 : vector<2x128xf32>
    %38 = vector.extract_strided_slice %37 {offsets = [0, 0], sizes = [2, 96], strides = [1, 1]} : vector<2x128xf32> to vector<2x96xf32>
    %39 = arith.negf %38 : vector<2x96xf32>
    %40 = math.exp %39 : vector<2x96xf32>
    %cst_19 = arith.constant 1.000000e+00 : f32
    %41 = vector.broadcast %cst_19 : f32 to vector<2x96xf32>
    %42 = arith.addf %41, %40 : vector<2x96xf32>
    %43 = arith.divf %41, %42 : vector<2x96xf32>
    %44 = vector.extract_strided_slice %43 {offsets = [0, 0], sizes = [2, 32], strides = [1, 1]} : vector<2x96xf32> to vector<2x32xf32>
    %45 = vector.extract_strided_slice %43 {offsets = [0, 32], sizes = [2, 32], strides = [1, 1]} : vector<2x96xf32> to vector<2x32xf32>
    %46 = vector.extract_strided_slice %43 {offsets = [0, 64], sizes = [2, 32], strides = [1, 1]} : vector<2x96xf32> to vector<2x32xf32>
    %47 = vector.extract_strided_slice %37 {offsets = [0, 96], sizes = [2, 32], strides = [1, 1]} : vector<2x128xf32> to vector<2x32xf32>
    %48 = math.tanh %47 : vector<2x32xf32>
    %49 = arith.mulf %45, %29 : vector<2x32xf32>
    %50 = arith.mulf %44, %48 : vector<2x32xf32>
    %51 = arith.addf %49, %50 : vector<2x32xf32>
    %52 = math.tanh %51 : vector<2x32xf32>
    %53 = arith.mulf %46, %52 : vector<2x32xf32>
    %54 = arith.truncf %53 : vector<2x32xf32> to vector<2x32xbf16>
    %c0_20 = arith.constant 0 : index
    %c0_21 = arith.constant 0 : index
    %55 = vector.load %arg5[%c0_20, %c0_21] : memref<32x128xbf16, #tpu.memory_space<vmem>>, vector<32x128xbf16>
    %cst_22 = arith.constant dense<0.000000e+00> : vector<2x128xf32>
    %56 = tpu.matmul %54, %55, %cst_22 {dimension_numbers = #tpu.dot_dimension_numbers<[1], [0], [0], [1], [0, 0, 1, 1], [], []>} : vector<2x32xbf16>, vector<32x128xbf16>, vector<2x128xf32> -> vector<2x128xf32>
    %c0_23 = arith.constant 0 : index
    %c0_24 = arith.constant 0 : index
    %57 = vector.load %arg6[%c0_23, %c0_24] : memref<1x128xf32, #tpu.memory_space<vmem>>, vector<1x128xf32>
    %58 = vector.broadcast %57 : vector<1x128xf32> to vector<2x128xf32>
    %59 = arith.addf %56, %58 : vector<2x128xf32>
    %c0_25 = arith.constant 0 : index
    %c0_26 = arith.constant 0 : index
    %60 = vector.load %arg7[%c0_25, %c0_26] : memref<2x128xf32, #tpu.memory_space<vmem>>, vector<2x128xf32>
    tpu.vector_store %arg7[%c0_25, %c0_26], %59 {strides = array<i32>} : memref<2x128xf32, #tpu.memory_space<vmem>>, vector<2x128xf32>,
    return
  }
  func.func @transform_0(%arg0: i32) -> (i32, i32) {
    %c0_i32 = arith.constant 0 : i32
    %c0_i32_0 = arith.constant 0 : i32
    return %arg0, %c0_i32 : i32, i32
  }
  func.func @transform_1(%arg0: i32) -> (i32, i32) {
    %c0_i32 = arith.constant 0 : i32
    %c0_i32_0 = arith.constant 0 : i32
    %c0_i32_1 = arith.constant 0 : i32
    return %c0_i32, %c0_i32_0 : i32, i32
  }
  func.func @transform_2(%arg0: i32) -> (i32, i32) {
    %c0_i32 = arith.constant 0 : i32
    %c0_i32_0 = arith.constant 0 : i32
    %c0_i32_1 = arith.constant 0 : i32
    return %c0_i32, %c0_i32_0 : i32, i32
  }
  func.func @transform_3(%arg0: i32) -> (i32, i32) {
    %c0_i32 = arith.constant 0 : i32
    %c0_i32_0 = arith.constant 0 : i32
    %c0_i32_1 = arith.constant 0 : i32
    return %c0_i32, %c0_i32_0 : i32, i32
  }
  func.func @transform_4(%arg0: i32) -> (i32, i32) {
    %c0_i32 = arith.constant 0 : i32
    %c0_i32_0 = arith.constant 0 : i32
    %c0_i32_1 = arith.constant 0 : i32
    return %c0_i32, %c0_i32_0 : i32, i32
  }
  func.func @transform_5(%arg0: i32) -> (i32, i32) {
    %c0_i32 = arith.constant 0 : i32
    %c0_i32_0 = arith.constant 0 : i32
    %c0_i32_1 = arith.constant 0 : i32
    return %c0_i32, %c0_i32_0 : i32, i32
  }
  func.func @transform_6(%arg0: i32) -> (i32, i32) {
    %c0_i32 = arith.constant 0 : i32
    %c0_i32_0 = arith.constant 0 : i32
    return %arg0, %c0_i32 : i32, i32
  }
}

</mosaic_0001>

<llo_original>
// kernel: _lambda_.1
$region0: #{_lambda_.1}
  #allocation0 [shape = 'u32[]', space=smem, size = 0x4, offset = 0x4, fixed_abs, tag = 'smem constant byte address 0x4 - core index']
  #allocation1 [shape = 'u32[144,128]{1,0:T(1,128)}', space=vmem, size = 0x12000, scoped, tag = 'internal scratch']
  #allocation2 [shape = 'bf16[4,128]{1,0:T(4,128)(2,1)}', space=vmem, size = 0x400, scoped, tag = 'scratch operand']
  %s0 = inlined_call_operand.vmem [shape: bf16[4,128], index: 0, kind: input, shape index: {}]
  %s1 = inlined_call_operand.vmem [shape: bf16[128,128], index: 1, kind: input, shape index: {}]
  %s2 = inlined_call_operand.vmem [shape: f32[1,128], index: 2, kind: input, shape index: {}]
  %s3 = inlined_call_operand.vmem [shape: bf16[32,128], index: 3, kind: input, shape index: {}]
  %s4 = inlined_call_operand.vmem [shape: bf16[32,128], index: 4, kind: input, shape index: {}]
  %s5 = inlined_call_operand.vmem [shape: f32[1,128], index: 5, kind: input, shape index: {}]
  %s6 = inlined_call_operand.hbm [shape: f32[2,128], index: 6, kind: output, shape index: {}]
  %s7 = sld [smem:[#allocation0]]
  $region34: #{_lambda_.1} parent=0
    _
  %s9 = ssub.s32 1, %s7
  %s10 = scalar_select 0, %s9, %s7
  $region1: #{_lambda_.1} parent=0
    #allocation3 [shape = 'u8[1024]{0}', space=vmem, size = 0x400, scoped, tag = 'output window, operand 0, single buffered']
    #allocation4 [shape = 's32[1]{0}', space=sflag, size = 0x4, scoped, tag = 'scoped memory for _lambda_.1']
    %11 = vsyncpa [#allocation4], 0
    // Predicated region
    $region2: #{_lambda_.1} parent=1 // pred_check
      _
    $region3: #{_lambda_.1} parent=1 // pred_check_branch
      %13 = sbr.rel (0) target = $region5
    $region4: #{_lambda_.1} parent=1 // pred_region
      _
    $region5: #{_lambda_.1} parent=1 // pred_fallthru
      _
    // Predicated region
    $region6: #{_lambda_.1} parent=1 // pred_check
      _
    $region7: #{_lambda_.1} parent=1 // pred_check_branch
      %15 = sbr.rel (0) target = $region9
    $region8: #{_lambda_.1} parent=1 // pred_region
      _
    $region9: #{_lambda_.1} parent=1 // pred_fallthru
      _
    // Predicated region
    $region10: #{_lambda_.1} parent=1 // pred_check
      _
    $region11: #{_lambda_.1} parent=1 // pred_check_branch
      %17 = sbr.rel (0) target = $region13
    $region12: #{_lambda_.1} parent=1 // pred_region
      _
    $region13: #{_lambda_.1} parent=1 // pred_fallthru
      _
    // Predicated region
    $region14: #{_lambda_.1} parent=1 // pred_check
      _
    $region15: #{_lambda_.1} parent=1 // pred_check_branch
      %19 = sbr.rel (0) target = $region17
    $region16: #{_lambda_.1} parent=1 // pred_region
      _
    $region17: #{_lambda_.1} parent=1 // pred_fallthru
      _
    // Predicated region
    $region18: #{_lambda_.1} parent=1 // pred_check
      _
    $region19: #{_lambda_.1} parent=1 // pred_check_branch
      %21 = sbr.rel (0) target = $region21
    $region20: #{_lambda_.1} parent=1 // pred_region
      _
    $region21: #{_lambda_.1} parent=1 // pred_fallthru
      _
    // Predicated region
    $region22: #{_lambda_.1} parent=1 // pred_check
      _
    $region23: #{_lambda_.1} parent=1 // pred_check_branch
      %23 = sbr.rel (0) target = $region25
    $region24: #{_lambda_.1} parent=1 // pred_region
      _
    $region25: #{_lambda_.1} parent=1 // pred_fallthru
      _
    %v25 = vld [vmem:[%s0] sm:$0x3]
    %v26 = vld [vmem:[%s1] sm:$0xf]
    %v27 = vld [vmem:[%s1 + $0x4] sm:$0xf]
    %v28 = vld [vmem:[%s1 + $0x8] sm:$0xf]
    %v29 = vld [vmem:[%s1 + $0xc] sm:$0xf]
    %v30 = vld [vmem:[%s1 + $0x10] sm:$0xf]
    %v31 = vld [vmem:[%s1 + $0x14] sm:$0xf]
    %v32 = vld [vmem:[%s1 + $0x18] sm:$0xf]
    %v33 = vld [vmem:[%s1 + $0x1c] sm:$0xf]
    %v34 = vld [vmem:[%s1 + $0x20] sm:$0xf]
    %v35 = vld [vmem:[%s1 + $0x24] sm:$0xf]
    %v36 = vld [vmem:[%s1 + $0x28] sm:$0xf]
    %v37 = vld [vmem:[%s1 + $0x2c] sm:$0xf]
    %v38 = vld [vmem:[%s1 + $0x30] sm:$0xf]
    %v39 = vld [vmem:[%s1 + $0x34] sm:$0xf]
    %v40 = vld [vmem:[%s1 + $0x38] sm:$0xf]
    %v41 = vld [vmem:[%s1 + $0x3c] sm:$0xf]
    %v42 = vld [vmem:[%s2] sm:$0x1]
    %v44 = vlaneseq
    %v45 = vshrl.u32 %v44, 7
    %v46 = vsub.s32 0, %v45
    %v47 = vrot.slane %v42, %v46
    %v65 = vunpack.c.l.b16 %v26
    %v66 = vunpack.c.l.b16 %v27
    %v67 = vunpack.c.l.b16 %v28
    %v68 = vunpack.c.l.b16 %v29
    %v69 = vunpack.c.l.b16 %v30
    %v70 = vunpack.c.l.b16 %v31
    %v71 = vunpack.c.l.b16 %v32
    %v72 = vunpack.c.l.b16 %v33
    %v73 = vunpack.c.l.b16 %v34
    %v74 = vunpack.c.l.b16 %v35
    %v75 = vunpack.c.l.b16 %v36
    %v76 = vunpack.c.l.b16 %v37
    %v77 = vunpack.c.l.b16 %v38
    %v78 = vunpack.c.l.b16 %v39
    %v79 = vunpack.c.l.b16 %v40
    %v80 = vunpack.c.l.b16 %v41
    %v81 = vpack.c.b16 %v66, %v65
    %v82 = vpack.c.b16 %v68, %v67
    %v83 = vpack.c.b16 %v70, %v69
    %v84 = vpack.c.b16 %v72, %v71
    %v85 = vpack.c.b16 %v74, %v73
    %v86 = vpack.c.b16 %v76, %v75
    %v87 = vpack.c.b16 %v78, %v77
    %v88 = vpack.c.b16 %v80, %v79
    %97 = vmatprep.subr.bf16.mxu0 0
    %98 = vmatpush1.bf16.msra.mxu0 %v88
    %99 = vmatprep.subr.bf16.mxu0 0
    %100 = vmatpush1.bf16.msra.mxu0 %v87
    %101 = vmatprep.subr.bf16.mxu0 0
    %102 = vmatpush1.bf16.msra.mxu0 %v86
    %103 = vmatprep.subr.bf16.mxu0 0
    %104 = vmatpush1.bf16.msra.mxu0 %v85
    %105 = vmatprep.subr.bf16.mxu0 0
    %106 = vmatpush1.bf16.msra.mxu0 %v84
    %107 = vmatprep.subr.bf16.mxu0 0
    %108 = vmatpush1.bf16.msra.mxu0 %v83
    %109 = vmatprep.subr.bf16.mxu0 0
    %110 = vmatpush1.bf16.msra.mxu0 %v82
    %111 = vmatprep.subr.bf16.mxu0 0
    %112 = vmatpush1.bf16.msra.mxu0 %v81
    %113 = vmatprep.subr.bf16.mxu0 0
    %114 = vmatpush2.bf16.msra.mxu0 0
    %115 = vmatprep.subr.bf16.mxu0 0
    %116 = vmatpush2.bf16.msra.mxu0 0
    %117 = vmatprep.subr.bf16.mxu0 0
    %118 = vmatpush2.bf16.msra.mxu0 0
    %119 = vmatprep.subr.bf16.mxu0 0
    %120 = vmatpush2.bf16.msra.mxu0 0
    %121 = vmatprep.subr.bf16.mxu0 0
    %122 = vmatpush2.bf16.msra.mxu0 0
    %123 = vmatprep.subr.bf16.mxu0 0
    %124 = vmatpush2.bf16.msra.mxu0 0
    %125 = vmatprep.subr.bf16.mxu0 0
    %126 = vmatpush2.bf16.msra.mxu0 0
    %127 = vmatprep.subr.bf16.mxu0 0
    %128 = vmatpush2.bf16.msra.mxu0 0
    %129 = vmatprep.mubr.bf16.mxu0 0
    %130 = vmatmul.mubr.bf16.gmra.mxu0 %v25
    %v131 = vpop.f32.mrf.mxu0
    %v132 = vadd.f32 %v47, %v131
    %v133 = vpop.f32.mrf.mxu0
    %v134 = vpop.f32.mrf.mxu0
    %v135 = vpop.f32.mrf.mxu0
    %136 = vdwg.mxu0
    %v137 = vpack.c.bf16 %v132, %v132
    %138 = vst [vmem:[#allocation2] sm:$0x3] %v137
    %v139 = vld [vmem:[#allocation2] sm:$0x1]
    %v140 = vunpack.c.l.bf16 %v139
    %v141 = vld [vmem:[%s3] sm:$0xf]
    %v142 = vld [vmem:[%s3 + $0x4] sm:$0xf]
    %v143 = vld [vmem:[%s3 + $0x8] sm:$0xf]
    %v144 = vld [vmem:[%s3 + $0xc] sm:$0xf]
    %v149 = vunpack.c.l.b16 %v141
    %v150 = vunpack.c.l.b16 %v142
    %v151 = vunpack.c.l.b16 %v143
    %v152 = vunpack.c.l.b16 %v144
    %v153 = vpack.c.b16 %v150, %v149
    %v154 = vpack.c.b16 %v152, %v151
    %vm157 = vcmask 261120
    %v159 = vsel %vm157, 0, 0
    %161 = vmatprep.subr.bf16.mxu0 0
    %162 = vmatpush1.bf16.msra.mxu0 0
    %163 = vmatprep.subr.bf16.mxu0 0
    %164 = vmatpush1.bf16.msra.mxu0 0
    %165 = vmatprep.subr.bf16.mxu0 0
    %166 = vmatpush1.bf16.msra.mxu0 0
    %167 = vmatprep.subr.bf16.mxu0 0
    %168 = vmatpush1.bf16.msra.mxu0 0
    %169 = vmatprep.subr.bf16.mxu0 0
    %170 = vmatpush1.bf16.msra.mxu0 0
    %171 = vmatprep.subr.bf16.mxu0 0
    %172 = vmatpush1.bf16.msra.mxu0 0
    %173 = vmatprep.subr.bf16.mxu0 0
    %174 = vmatpush1.bf16.msra.mxu0 %v154
    %175 = vmatprep.subr.bf16.mxu0 0
    %176 = vmatpush1.bf16.msra.mxu0 %v153
    %177 = vmatprep.subr.bf16.mxu0 0
    %178 = vmatpush2.bf16.msra.mxu0 0
    %179 = vmatprep.subr.bf16.mxu0 0
    %180 = vmatpush2.bf16.msra.mxu0 0
    %181 = vmatprep.subr.bf16.mxu0 0
    %182 = vmatpush2.bf16.msra.mxu0 0
    %183 = vmatprep.subr.bf16.mxu0 0
    %184 = vmatpush2.bf16.msra.mxu0 0
    %185 = vmatprep.subr.bf16.mxu0 0
    %186 = vmatpush2.bf16.msra.mxu0 0
    %187 = vmatprep.subr.bf16.mxu0 0
    %188 = vmatpush2.bf16.msra.mxu0 0
    %189 = vmatprep.subr.bf16.mxu0 0
    %190 = vmatpush2.bf16.msra.mxu0 0
    %191 = vmatprep.subr.bf16.mxu0 0
    %192 = vmatpush2.bf16.msra.mxu0 0
    %193 = vmatprep.mubr.bf16.mxu0 0
    %194 = vmatmul.mubr.bf16.gmra.mxu0 %v159
    %v195 = vpop.f32.mrf.mxu0
    %v196 = vadd.f32 0.0, %v195
    %v197 = vpop.f32.mrf.mxu0
    %v198 = vpop.f32.mrf.mxu0
    %v199 = vpop.f32.mrf.mxu0
    %200 = vdwg.mxu0
    %v201 = vadd.f32 %v140, %v196
    %v202 = vxor.u32 %v201, 2147483648
    %v203 = vmul.f32 %v202, 1.442695
    %v204 = vpow.pop %v203
    %v205 = vadd.f32 %v204, 1.0
    %v206 = vrcp.pop %v205
    %v207 = vmul.f32 1.0, %v206
    %v208 = vtanh.pop %v201
    %v209 = vmul.f32 %v207, 0.0
    %211 = vrot.lane.b32.xlu0 %v208, 32
    %v212 = vpop.permute.xlu0 %211
    %v214 = vmul.f32 %v207, %v212
    %216 = vrot.lane.b32.xlu0 %v214, 32
    %v217 = vpop.permute.xlu0 %216
    %v219 = vadd.f32 %v209, %v217
    %v220 = vtanh.pop %v219
    %222 = vrot.lane.b32.xlu0 %v220, 32
    %v223 = vpop.permute.xlu0 %222
    %v225 = vmul.f32 %v207, %v223
    %v226 = vld [vmem:[#allocation2] sm:$0x2]
    %v227 = vunpack.c.l.bf16 %v226
    %v228 = vpack.c.bf16 %v225, %v225
    %230 = vrot.lane.b32.xlu0 %v228, 64
    %v231 = vpop.permute.xlu0 %230
    %v233 = vsel %vm157, %v231, 0
    %235 = vmatprep.subr.bf16.mxu0 0
    %236 = vmatpush1.bf16.msra.mxu0 0
    %237 = vmatprep.subr.bf16.mxu0 0
    %238 = vmatpush1.bf16.msra.mxu0 0
    %239 = vmatprep.subr.bf16.mxu0 0
    %240 = vmatpush1.bf16.msra.mxu0 0
    %241 = vmatprep.subr.bf16.mxu0 0
    %242 = vmatpush1.bf16.msra.mxu0 0
    %243 = vmatprep.subr.bf16.mxu0 0
    %244 = vmatpush1.bf16.msra.mxu0 0
    %245 = vmatprep.subr.bf16.mxu0 0
    %246 = vmatpush1.bf16.msra.mxu0 0
    %247 = vmatprep.subr.bf16.mxu0 0
    %248 = vmatpush1.bf16.msra.mxu0 %v154
    %249 = vmatprep.subr.bf16.mxu0 0
    %250 = vmatpush1.bf16.msra.mxu0 %v153
    %251 = vmatprep.subr.bf16.mxu0 0
    %252 = vmatpush2.bf16.msra.mxu0 0
    %253 = vmatprep.subr.bf16.mxu0 0
    %254 = vmatpush2.bf16.msra.mxu0 0
    %255 = vmatprep.subr.bf16.mxu0 0
    %256 = vmatpush2.bf16.msra.mxu0 0
    %257 = vmatprep.subr.bf16.mxu0 0
    %258 = vmatpush2.bf16.msra.mxu0 0
    %259 = vmatprep.subr.bf16.mxu0 0
    %260 = vmatpush2.bf16.msra.mxu0 0
    %261 = vmatprep.subr.bf16.mxu0 0
    %262 = vmatpush2.bf16.msra.mxu0 0
    %263 = vmatprep.subr.bf16.mxu0 0
    %264 = vmatpush2.bf16.msra.mxu0 0
    %265 = vmatprep.subr.bf16.mxu0 0
    %266 = vmatpush2.bf16.msra.mxu0 0
    %267 = vmatprep.mubr.bf16.mxu0 0
    %268 = vmatmul.mubr.bf16.gmra.mxu0 %v233
    %v269 = vpop.f32.mrf.mxu0
    %v270 = vadd.f32 0.0, %v269
    %v271 = vpop.f32.mrf.mxu0
    %v272 = vpop.f32.mrf.mxu0
    %v273 = vpop.f32.mrf.mxu0
    %274 = vdwg.mxu0
    %v276 = vrot.slane %v270, 6
    %v278 = vadd.f32 %v227, %v276
    %v279 = vxor.u32 %v278, 2147483648
    %v280 = vmul.f32 %v279, 1.442695
    %v281 = vpow.pop %v280
    %v282 = vadd.f32 %v281, 1.0
    %v283 = vrcp.pop %v282
    %v284 = vmul.f32 1.0, %v283
    %v285 = vtanh.pop %v278
    %v287 = vrot.slane %v219, 6
    %v289 = vmul.f32 %v284, %v287
    %291 = vrot.lane.b32.xlu0 %v285, 32
    %v292 = vpop.permute.xlu0 %291
    %v294 = vmul.f32 %v284, %v292
    %296 = vrot.lane.b32.xlu0 %v294, 32
    %v297 = vpop.permute.xlu0 %296
    %v299 = vadd.f32 %v289, %v297
    %v300 = vtanh.pop %v299
    %302 = vrot.lane.b32.xlu0 %v300, 32
    %v303 = vpop.permute.xlu0 %302
    %v305 = vmul.f32 %v284, %v303
    %v306 = vpack.c.bf16 %v305, %v305
    %v307 = vld [vmem:[%s4] sm:$0xf]
    %v308 = vld [vmem:[%s4 + $0x4] sm:$0xf]
    %v309 = vld [vmem:[%s4 + $0x8] sm:$0xf]
    %v310 = vld [vmem:[%s4 + $0xc] sm:$0xf]
    %v311 = vld [vmem:[%s5] sm:$0x1]
    %v313 = vlaneseq
    %v314 = vshrl.u32 %v313, 7
    %v315 = vsub.s32 0, %v314
    %v316 = vrot.slane %v311, %v315
    %v319 = vrot.slane %v306, 1
    %320 = vrot.lane.b32.xlu0 %v319, 64
    %v321 = vpop.permute.xlu0 %320
    %v326 = vunpack.c.l.b16 %v307
    %v327 = vunpack.c.l.b16 %v308
    %v328 = vunpack.c.l.b16 %v309
    %v329 = vunpack.c.l.b16 %v310
    %v330 = vpack.c.b16 %v327, %v326
    %v331 = vpack.c.b16 %v329, %v328
    %v335 = vsel %vm157, %v321, 0
    %337 = vmatprep.subr.bf16.mxu0 0
    %338 = vmatpush1.bf16.msra.mxu0 0
    %339 = vmatprep.subr.bf16.mxu0 0
    %340 = vmatpush1.bf16.msra.mxu0 0
    %341 = vmatprep.subr.bf16.mxu0 0
    %342 = vmatpush1.bf16.msra.mxu0 0
    %343 = vmatprep.subr.bf16.mxu0 0
    %344 = vmatpush1.bf16.msra.mxu0 0
    %345 = vmatprep.subr.bf16.mxu0 0
    %346 = vmatpush1.bf16.msra.mxu0 0
    %347 = vmatprep.subr.bf16.mxu0 0
    %348 = vmatpush1.bf16.msra.mxu0 0
    %349 = vmatprep.subr.bf16.mxu0 0
    %350 = vmatpush1.bf16.msra.mxu0 %v331
    %351 = vmatprep.subr.bf16.mxu0 0
    %352 = vmatpush1.bf16.msra.mxu0 %v330
    %353 = vmatprep.subr.bf16.mxu0 0
    %354 = vmatpush2.bf16.msra.mxu0 0
    %355 = vmatprep.subr.bf16.mxu0 0
    %356 = vmatpush2.bf16.msra.mxu0 0
    %357 = vmatprep.subr.bf16.mxu0 0
    %358 = vmatpush2.bf16.msra.mxu0 0
    %359 = vmatprep.subr.bf16.mxu0 0
    %360 = vmatpush2.bf16.msra.mxu0 0
    %361 = vmatprep.subr.bf16.mxu0 0
    %362 = vmatpush2.bf16.msra.mxu0 0
    %363 = vmatprep.subr.bf16.mxu0 0
    %364 = vmatpush2.bf16.msra.mxu0 0
    %365 = vmatprep.subr.bf16.mxu0 0
    %366 = vmatpush2.bf16.msra.mxu0 0
    %367 = vmatprep.subr.bf16.mxu0 0
    %368 = vmatpush2.bf16.msra.mxu0 0
    %369 = vmatprep.mubr.bf16.mxu0 0
    %370 = vmatmul.mubr.bf16.gmra.mxu0 %v335
    %v371 = vpop.f32.mrf.mxu0
    %v372 = vadd.f32 %v316, %v371
    %v373 = vpop.f32.mrf.mxu0
    %v374 = vpop.f32.mrf.mxu0
    %v375 = vpop.f32.mrf.mxu0
    %376 = vdwg.mxu0
    %377 = vst [vmem:[#allocation3] sm:$0x3] %v372
    // Predicated region
    $region26: #{_lambda_.1} parent=1 // pred_check
      _
    $region27: #{_lambda_.1} parent=1 // pred_check_branch
      %379 = sbr.rel (0) target = $region29
    $region28: #{_lambda_.1} parent=1 // pred_region
      %s381 = ssub.s32 32, 32
      %382 = vsyncadd [#allocation4], %s381
      %s384 = sshll.u32 [#allocation3], 4
      %s385 = int_to_ptr.vmem [resolvable:$true] %s384
      %387 = dma.vmem_to_hbm [thread:$0]  %s385, 32, %s6, [#allocation4]
    $region29: #{_lambda_.1} parent=1 // pred_fallthru
      _
    // Predicated region
    $region30: #{_lambda_.1} parent=1 // pred_check
      _
    $region31: #{_lambda_.1} parent=1 // pred_check_branch
      %389 = sbr.rel (0) target = $region33
    $region32: #{_lambda_.1} parent=1 // pred_region
      %390 = dma.done [#allocation4], 32
    $region33: #{_lambda_.1} parent=1 // pred_fallthru
      _
    %391 = vsyncpa [#allocation4], 1

</llo_original>
